<compile_context>
chip_gen: v6e
topology: v6e:2x2x1
jax: 0.10.0
libtpu: 0.0.40
codegen_flags: <defaults>
</compile_context>

<pallas_src>
import functools
import math

import jax
import jax.numpy as jnp
from jax.experimental import pallas as pl
from jax.experimental.pallas import tpu as pltpu


def _cdiv(a, b):
    return -(-a // b)


def _round_up(x, m):
    return _cdiv(x, m) * m


# ----------------------- kernels: full-V row tiles ------------------------- #

def _ce_fullv_kernel(x_ref, lab_ref, out_ref):
    """loss_i = logsumexp(x_i) - x_i[label_i]  (== CE(log_softmax(x), label))."""
    x = x_ref[...].astype(jnp.float32)                                   # (TN, V)
    m = jnp.max(x, axis=-1, keepdims=True)
    lse = m + jnp.log(jnp.sum(jnp.exp(x - m), axis=-1, keepdims=True))   # (TN, 1)
    lab = lab_ref[...]                                                   # (TN, 1)
    col = jax.lax.broadcasted_iota(jnp.int32, x.shape, 1)
    x_lab = jnp.sum(jnp.where(col == lab, x, 0.0), axis=-1, keepdims=True)
    out_ref[...] = (lse - x_lab).astype(out_ref.dtype)                   # (TN, 1)


def _kl_fullv_kernel(x_ref, lab_ref, out_ref, *, confidence, smooth_val,
                     conf_logconf, smooth_logsmooth):
    """KLDivLoss(reduction='none') vs label-smoothed one-hot target.

    Single fused select: out = where(hit, c*log(c) - c*scores, s*log(s) - s*scores).
    """
    x = x_ref[...].astype(jnp.float32)                                   # (TN, V)
    m = jnp.max(x, axis=-1, keepdims=True)
    scores = x - (m + jnp.log(jnp.sum(jnp.exp(x - m), axis=-1, keepdims=True)))
    lab = lab_ref[...]                                                   # (TN, 1)
    col = jax.lax.broadcasted_iota(jnp.int32, x.shape, 1)
    hit = col == lab
    out = jnp.where(hit,
                    jnp.float32(conf_logconf) - jnp.float32(confidence) * scores,
                    jnp.float32(smooth_logsmooth) - jnp.float32(smooth_val) * scores)
    out_ref[...] = out.astype(out_ref.dtype)                             # (TN, V)


# -------------------- kernels: lane (V) tiled, large vocab ----------------- #

def _ce_vtile_kernel(x_ref, lab_ref, out_ref, m_sc, l_sc, xlab_sc, *, v_total, tv):
    """Online logsumexp + masked label gather over V tiles; finalize at last tile."""
    j = pl.program_id(1)
    nv = pl.num_programs(1)

    @pl.when(j == 0)
    def _():
        m_sc[...] = jnp.full(m_sc.shape, -jnp.inf, jnp.float32)
        l_sc[...] = jnp.zeros(l_sc.shape, jnp.float32)
        xlab_sc[...] = jnp.zeros(xlab_sc.shape, jnp.float32)

    x = x_ref[...].astype(jnp.float32)                                   # (TN, TV)
    col = j * tv + jax.lax.broadcasted_iota(jnp.int32, x.shape, 1)       # global col
    x_m = jnp.where(col < v_total, x, -jnp.inf)                          # mask OOB lanes
    m_prev = m_sc[...]
    m_new = jnp.maximum(m_prev, jnp.max(x_m, axis=-1, keepdims=True))
    l_sc[...] = l_sc[...] * jnp.exp(m_prev - m_new) + jnp.sum(
        jnp.exp(x_m - m_new), axis=-1, keepdims=True)
    lab = lab_ref[...]
    xlab_sc[...] += jnp.sum(jnp.where(col == lab, x, 0.0), axis=-1, keepdims=True)
    m_sc[...] = m_new

    @pl.when(j == nv - 1)
    def _():
        out_ref[...] = (m_sc[...] + jnp.log(l_sc[...]) - xlab_sc[...]).astype(out_ref.dtype)


def _lse_vtile_kernel(x_ref, out_ref, m_sc, l_sc, *, v_total, tv):
    """Per-row logsumexp over V tiles (pass 1 of the tiled KL path)."""
    j = pl.program_id(1)
    nv = pl.num_programs(1)

    @pl.when(j == 0)
    def _():
        m_sc[...] = jnp.full(m_sc.shape, -jnp.inf, jnp.float32)
        l_sc[...] = jnp.zeros(l_sc.shape, jnp.float32)

    x = x_ref[...].astype(jnp.float32)
    col = j * tv + jax.lax.broadcasted_iota(jnp.int32, x.shape, 1)
    x_m = jnp.where(col < v_total, x, -jnp.inf)
    m_prev = m_sc[...]
    m_new = jnp.maximum(m_prev, jnp.max(x_m, axis=-1, keepdims=True))
    l_sc[...] = l_sc[...] * jnp.exp(m_prev - m_new) + jnp.sum(
        jnp.exp(x_m - m_new), axis=-1, keepdims=True)
    m_sc[...] = m_new

    @pl.when(j == nv - 1)
    def _():
        out_ref[...] = m_sc[...] + jnp.log(l_sc[...])


def _kl_emit_kernel(x_ref, lab_ref, lse_ref, out_ref, *, tv, confidence, smooth_val,
                    conf_logconf, smooth_logsmooth):
    """Pass 2 of the tiled KL path: emit target*(log(target) - (x - lse)) per tile."""
    j = pl.program_id(1)
    x = x_ref[...].astype(jnp.float32)                                   # (TN, TV)
    scores = x - lse_ref[...]                                            # (TN, TV)
    lab = lab_ref[...]
    col = j * tv + jax.lax.broadcasted_iota(jnp.int32, x.shape, 1)
    hit = col == lab
    out = jnp.where(hit,
                    jnp.float32(conf_logconf) - jnp.float32(confidence) * scores,
                    jnp.float32(smooth_logsmooth) - jnp.float32(smooth_val) * scores)
    out_ref[...] = out.astype(out_ref.dtype)


# --------------------------- tile planning --------------------------------- #

def _vmem_capacity_bytes() -> int:
    """Per-core VMEM (128 MiB v5e/v6e, 64 MiB v7x); conservative fallback."""
    try:
        cap = getattr(pltpu.get_tpu_info(), "vmem_capacity_bytes", None)
        if cap:
            return int(cap)
    except Exception:
        pass
    return 64 * 1024 * 1024


def _vmem_limit(cap: int, working_set: int) -> int:
    """Scoped VMEM limit: generous vs the planned tile, but <= ~0.8 of physical."""
    return int(min(int(cap * 0.8), max(32 << 20, int(working_set * 1.5))))


def _plan(n_rows, vocab, in_bytes, out_v_bytes, f32_temps, tile_override=None):
    """Return (TN, TV_or_None, vmem_limit). TV=None -> full-V row tiles."""
    cap = _vmem_capacity_bytes()
    budget = cap // 2                       # working-set budget (headroom for scratch)
    per_elem = 2 * in_bytes + 2 * out_v_bytes + f32_temps * 4   # dbl-buf streams + f32 temps

    if tile_override is not None:
        tn, tv = tile_override
        width = vocab if tv is None else tv
        return tn, tv, _vmem_limit(cap, tn * width * per_elem)

    # -- preferred: single pass over full-V row tiles --------------------------------
    row_bytes = vocab * per_elem + 64
    tn = (budget // row_bytes) // 8 * 8
    if tn >= 8:
        rows_steps = _round_up(_cdiv(n_rows, 8), 8)                    # aim for >=8 steps
        rows_2mb = _round_up(_cdiv(2 << 20, max(vocab * in_bytes, 1)), 8)  # >= ~2 MiB blocks
        tn = min(tn, max(rows_steps, rows_2mb), 2048)
        tn = max(8, min(tn, _round_up(n_rows, 8)))
        return tn, None, _vmem_limit(cap, tn * row_bytes)

    # -- large vocab: tile the lane (V) axis ------------------------------------------
    tn = min(256, _round_up(n_rows, 8))
    tv = (budget // max(tn * per_elem, 1)) // 128 * 128
    tv = max(128, min(tv, _round_up(vocab, 128)))
    return tn, tv, _vmem_limit(cap, tn * tv * per_elem)


# ----------------------------- wrapper ------------------------------------ #

class NMTCriterionPallas:
    def __init__(self, label_smoothing: float = 0.0, reduction: str = 'none',
                 _tile_override=None):
        assert reduction == 'none'
        self.label_smoothing = float(label_smoothing)
        self.confidence = 1.0 - self.label_smoothing
        self._tile_override = _tile_override   # (TN, TV or None) -- testing/debug only

    def __call__(self, dec_outs: jax.Array, labels: jax.Array) -> jax.Array:
        N, V = dec_outs.shape
        gtruth = labels.reshape(-1).astype(jnp.int32)           # labels.view(-1)
        lab2d = gtruth.reshape(N, 1)
        smoothing = self.confidence < 1.0

        out_dtype = dec_outs.dtype                              # loss dtype matches input
        in_bytes = jnp.dtype(dec_outs.dtype).itemsize
        out_bytes = jnp.dtype(out_dtype).itemsize

        conf = smooth_val = conf_logconf = smooth_logsmooth = 0.0
        if smoothing:
            conf = self.confidence
            smooth_val = self.label_smoothing / (V - 1) if V > 1 else 0.0
            conf_logconf = conf * math.log(conf) if conf > 0.0 else 0.0
            smooth_logsmooth = smooth_val * math.log(smooth_val) if smooth_val > 0.0 else 0.0

        tn, tv, vmem_limit = _plan(
            N, V, in_bytes,
            out_v_bytes=out_bytes if smoothing else 0,
            f32_temps=5 if smoothing else 4,
            tile_override=self._tile_override)

        grid_rows = _cdiv(N, tn)
        n_elem = N * V

        # ------------------- full-V row tiles (common case) ------------------- #
        if tv is None:
            x_spec = pl.BlockSpec((tn, V), lambda i: (i, 0))
            lab_spec = pl.BlockSpec((tn, 1), lambda i: (i, 0))
            cparams = pltpu.CompilerParams(
                dimension_semantics=("parallel",), vmem_limit_bytes=vmem_limit)

            if smoothing:
                kernel = functools.partial(
                    _kl_fullv_kernel, confidence=conf, smooth_val=smooth_val,
                    conf_logconf=conf_logconf, smooth_logsmooth=smooth_logsmooth)
                return pl.pallas_call(
                    kernel,
                    out_shape=jax.ShapeDtypeStruct((N, V), out_dtype),
                    grid_spec=pltpu.PrefetchScalarGridSpec(
                        num_scalar_prefetch=0, grid=(grid_rows,),
                        in_specs=[x_spec, lab_spec],
                        out_specs=pl.BlockSpec((tn, V), lambda i: (i, 0))),
                    compiler_params=cparams,
                    cost_estimate=pl.CostEstimate(
                        flops=6 * n_elem, transcendentals=n_elem,
                        bytes_accessed=n_elem * (in_bytes + out_bytes) + N * 4),
                )(dec_outs, lab2d)

            out = pl.pallas_call(
                _ce_fullv_kernel,
                out_shape=jax.ShapeDtypeStruct((N, 1), out_dtype),
                grid_spec=pltpu.PrefetchScalarGridSpec(
                    num_scalar_prefetch=0, grid=(grid_rows,),
                    in_specs=[x_spec, lab_spec],
                    out_specs=pl.BlockSpec((tn, 1), lambda i: (i, 0))),
                compiler_params=cparams,
                cost_estimate=pl.CostEstimate(
                    flops=5 * n_elem, transcendentals=n_elem,
                    bytes_accessed=n_elem * in_bytes + N * (4 + out_bytes)),
            )(dec_outs, lab2d)
            return out[:, 0]

        # ---------------------- lane (V) tiled, large vocab -------------------- #
        grid = (grid_rows, _cdiv(V, tv))
        x_spec = pl.BlockSpec((tn, tv), lambda i, j: (i, j))
        lab_spec = pl.BlockSpec((tn, 1), lambda i, j: (i, 0))
        col_spec = pl.BlockSpec((tn, 1), lambda i, j: (i, 0))
        red_params = pltpu.CompilerParams(
            dimension_semantics=("parallel", "arbitrary"),
            vmem_limit_bytes=vmem_limit)

        if not smoothing:
            out = pl.pallas_call(
                functools.partial(_ce_vtile_kernel, v_total=V, tv=tv),
                out_shape=jax.ShapeDtypeStruct((N, 1), out_dtype),
                grid_spec=pltpu.PrefetchScalarGridSpec(
                    num_scalar_prefetch=0, grid=grid,
                    in_specs=[x_spec, lab_spec],
                    out_specs=col_spec,
                    scratch_shapes=[pltpu.VMEM((tn, 1), jnp.float32)] * 3),
                compiler_params=red_params,
                cost_estimate=pl.CostEstimate(
                    flops=6 * n_elem, transcendentals=n_elem,
                    bytes_accessed=n_elem * in_bytes + N * (4 + out_bytes)),
            )(dec_outs, lab2d)
            return out[:, 0]

        # KL with V tiling: pass 1 -> per-row logsumexp; pass 2 -> stream x again
        # and emit the (N, V) loss tile by tile (the full-V scores never live in VMEM).
        lse = pl.pallas_call(
            functools.partial(_lse_vtile_kernel, v_total=V, tv=tv),
            out_shape=jax.ShapeDtypeStruct((N, 1), jnp.float32),
            grid_spec=pltpu.PrefetchScalarGridSpec(
                num_scalar_prefetch=0, grid=grid,
                in_specs=[x_spec],
                out_specs=col_spec,
                scratch_shapes=[pltpu.VMEM((tn, 1), jnp.float32)] * 2),
            compiler_params=red_params,
            cost_estimate=pl.CostEstimate(
                flops=4 * n_elem, transcendentals=n_elem,
                bytes_accessed=n_elem * in_bytes + N * 4),
        )(dec_outs)

        kernel = functools.partial(
            _kl_emit_kernel, tv=tv, confidence=conf, smooth_val=smooth_val,
            conf_logconf=conf_logconf, smooth_logsmooth=smooth_logsmooth)
        return pl.pallas_call(
            kernel,
            out_shape=jax.ShapeDtypeStruct((N, V), out_dtype),
            grid_spec=pltpu.PrefetchScalarGridSpec(
                num_scalar_prefetch=0, grid=grid,
                in_specs=[x_spec, lab_spec, col_spec],
                out_specs=pl.BlockSpec((tn, tv), lambda i, j: (i, j))),
            compiler_params=pltpu.CompilerParams(
                dimension_semantics=("parallel", "parallel"),
                vmem_limit_bytes=vmem_limit),
            cost_estimate=pl.CostEstimate(
                flops=4 * n_elem, transcendentals=0,
                bytes_accessed=n_elem * (in_bytes + out_bytes) + N * 8),
        )(dec_outs, lab2d, lse)


# --------------------------- pure-JAX reference ---------------------------- #

def _reference(dec_outs, labels, label_smoothing):
    N, V = dec_outs.shape
    scores = jax.nn.log_softmax(dec_outs.astype(jnp.float32), axis=-1)
    gtruth = labels.reshape(-1)
    if label_smoothing > 0:
        conf = 1.0 - label_smoothing
        target = jnp.full((N, V), label_smoothing / (V - 1), jnp.float32)
        target = target.at[jnp.arange(N), gtruth].set(conf)
        return target * (jnp.log(target) - scores)
    else:
        s2 = jax.nn.log_softmax(scores, axis=-1)   # CE applies log_softmax again
        return -s2[jnp.arange(N), gtruth]


# --------------------------------- main ------------------------------------ #

if __name__ == "__main__":
    key = jax.random.PRNGKey(0)
    ks = jax.random.split(key, 6)

    # test 1: flattened (batch*seq = 16, vocab = 32) -- default plan, full-V path.
    N, V = 16, 32
    dec = jax.random.normal(ks[0], (N, V), dtype=jnp.float32)
    lab = jax.random.randint(ks[1], (N,), 0, V, dtype=jnp.int32)

    ce = jax.block_until_ready(NMTCriterionPallas(label_smoothing=0.0)(dec, lab))
    assert ce.shape == (N,)
    assert jnp.allclose(ce, _reference(dec, lab, 0.0), atol=2e-5), "CE path mismatch"

    kl = jax.block_until_ready(NMTCriterionPallas(label_smoothing=0.1)(dec, lab))
    assert kl.shape == (N, V)
    assert jnp.allclose(kl, _reference(dec, lab, 0.1), atol=2e-5), "KL path mismatch"

    # test 2: N not a multiple of the row tile -> ragged last row block (no pad/trim).
    N2, V2 = 13, 256
    dec2 = jax.random.normal(ks[2], (N2, V2), dtype=jnp.float32)
    lab2 = jax.random.randint(ks[3], (N2,), 0, V2, dtype=jnp.int32)

    ce2 = jax.block_until_ready(
        NMTCriterionPallas(0.0, _tile_override=(8, None))(dec2, lab2))
    assert ce2.shape == (N2,)
    assert jnp.allclose(ce2, _reference(dec2, lab2, 0.0), atol=2e-5), "CE ragged mismatch"

    kl2 = jax.block_until_ready(
        NMTCriterionPallas(0.1, _tile_override=(8, None))(dec2, lab2))
    assert kl2.shape == (N2, V2)
    assert jnp.allclose(kl2, _reference(dec2, lab2, 0.1), atol=2e-5), "KL ragged mismatch"

    # test 3: forced lane (V) tiling, incl. ragged last V block (200 % 128 != 0)
    #         -> online logsumexp CE + two-pass KL code paths.
    N3, V3 = 13, 200
    dec3 = jax.random.normal(ks[4], (N3, V3), dtype=jnp.float32)
    lab3 = jax.random.randint(ks[5], (N3,), 0, V3, dtype=jnp.int32)

    ce3 = jax.block_until_ready(
        NMTCriterionPallas(0.0, _tile_override=(8, 128))(dec3, lab3))
    assert ce3.shape == (N3,)
    assert jnp.allclose(ce3, _reference(dec3, lab3, 0.0), atol=2e-5), "CE V-tiled mismatch"

    kl3 = jax.block_until_ready(
        NMTCriterionPallas(0.1, _tile_override=(8, 128))(dec3, lab3))
    assert kl3.shape == (N3, V3)
    assert jnp.allclose(kl3, _reference(dec3, lab3, 0.1), atol=2e-5), "KL V-tiled mismatch"

    # test 4: bf16 input -> bf16 loss (dtype-matched writeback), values still close.
    dec_bf = dec.astype(jnp.bfloat16)
    kl_bf = jax.block_until_ready(NMTCriterionPallas(label_smoothing=0.1)(dec_bf, lab))
    assert kl_bf.dtype == jnp.bfloat16
    ref_bf = _reference(dec_bf, lab, 0.1)
    assert jnp.allclose(kl_bf.astype(jnp.float32), ref_bf, atol=5e-2), "bf16 KL mismatch"

    print("KERNEL_OK")
</pallas_src>

<mosaic_0001>
module attributes {stable_mosaic.version = 11 : i64} {
  func.func @_ce_fullv_kernel(%arg0: i32, %arg1: memref<16x32xf32, #tpu.memory_space<vmem>>, %arg2: memref<16x1xi32, #tpu.memory_space<vmem>>, %arg3: memref<16x1xf32, #tpu.memory_space<vmem>>) attributes {dimension_semantics = [#tpu.dimension_semantics<parallel>], iteration_bounds = array<i64: 1>, scalar_prefetch = 0 : i64, scratch_operands = 0 : i64, tpu.core_type = #tpu.core_type<tc>, window_params = [{transform_indices = @transform_0, window_bounds = array<i64: 16, 32>}, {transform_indices = @transform_1, window_bounds = array<i64: 16, 1>}, {transform_indices = @transform_2, window_bounds = array<i64: 16, 1>}]} {
    %c0 = arith.constant 0 : index
    %c0_0 = arith.constant 0 : index
    %0 = vector.load %arg1[%c0, %c0_0] : memref<16x32xf32, #tpu.memory_space<vmem>>, vector<16x32xf32>
    %cst = arith.constant dense<0xFF800000> : vector<16xf32>
    %1 = vector.multi_reduction <maximumf>, %0, %cst [1] : vector<16x32xf32> to vector<16xf32>
    %2 = vector.shape_cast %1 : vector<16xf32> to vector<16x1xf32>
    %3 = vector.broadcast %2 : vector<16x1xf32> to vector<16x32xf32>
    %4 = arith.subf %0, %3 : vector<16x32xf32>
    %5 = math.exp %4 : vector<16x32xf32>
    %cst_1 = arith.constant dense<0.000000e+00> : vector<16xf32>
    %6 = vector.multi_reduction <add>, %5, %cst_1 [1] : vector<16x32xf32> to vector<16xf32>
    %7 = vector.shape_cast %6 : vector<16xf32> to vector<16x1xf32>
    %8 = math.log %7 : vector<16x1xf32>
    %9 = arith.addf %2, %8 : vector<16x1xf32>
    %c0_2 = arith.constant 0 : index
    %c0_3 = arith.constant 0 : index
    %10 = vector.load %arg2[%c0_2, %c0_3] : memref<16x1xi32, #tpu.memory_space<vmem>>, vector<16x1xi32>
    %11 = tpu.iota {dimensions = array<i32: 1>} : vector<16x32xi32>
    %12 = vector.broadcast %10 : vector<16x1xi32> to vector<16x32xi32>
    %13 = arith.cmpi eq, %11, %12 : vector<16x32xi32>
    %cst_4 = arith.constant 0.000000e+00 : f32
    %14 = vector.broadcast %cst_4 : f32 to vector<16x32xf32>
    %15 = arith.select %13, %0, %14 : vector<16x32xi1>, vector<16x32xf32>
    %cst_5 = arith.constant dense<0.000000e+00> : vector<16xf32>
    %16 = vector.multi_reduction <add>, %15, %cst_5 [1] : vector<16x32xf32> to vector<16xf32>
    %17 = vector.shape_cast %16 : vector<16xf32> to vector<16x1xf32>
    %18 = arith.subf %9, %17 : vector<16x1xf32>
    %c0_6 = arith.constant 0 : index
    %c0_7 = arith.constant 0 : index
    %19 = vector.load %arg3[%c0_6, %c0_7] : memref<16x1xf32, #tpu.memory_space<vmem>>, vector<16x1xf32>
    tpu.vector_store %arg3[%c0_6, %c0_7], %18 {strides = array<i32>} : memref<16x1xf32, #tpu.memory_space<vmem>>, vector<16x1xf32>,
    return
  }
  func.func @transform_0(%arg0: i32) -> (i32, i32) {
    %c0_i32 = arith.constant 0 : i32
    %c0_i32_0 = arith.constant 0 : i32
    return %arg0, %c0_i32 : i32, i32
  }
  func.func @transform_1(%arg0: i32) -> (i32, i32) {
    %c0_i32 = arith.constant 0 : i32
    %c0_i32_0 = arith.constant 0 : i32
    return %arg0, %c0_i32 : i32, i32
  }
  func.func @transform_2(%arg0: i32) -> (i32, i32) {
    %c0_i32 = arith.constant 0 : i32
    %c0_i32_0 = arith.constant 0 : i32
    return %arg0, %c0_i32 : i32, i32
  }
}

</mosaic_0001>

<llo_original>
// kernel: tpu_custom_call.1
$region0: #{tpu_custom_call.1}
  #allocation0 [shape = 'u32[]', space=smem, size = 0x4, offset = 0x4, fixed_abs, tag = 'smem constant byte address 0x4 - core index']
  #allocation1 [shape = 'u32[144,128]{1,0:T(1,128)}', space=vmem, size = 0x12000, scoped, tag = 'internal scratch']
  %s0 = inlined_call_operand.vmem [shape: f32[16,32], index: 0, kind: input, shape index: {}]
  %s1 = inlined_call_operand.vmem [shape: s32[16,1], index: 1, kind: input, shape index: {}]
  %s2 = inlined_call_operand.vmem [shape: f32[16,1], index: 2, kind: output, shape index: {}]
  %s3 = sld [smem:[#allocation0]]
  $region18: #{tpu_custom_call.1} parent=0
    _
  %s5 = ssub.s32 1, %s3
  %s6 = scalar_select 0, %s5, %s3
  // Predicated region
  $region2: #{tpu_custom_call.1} parent=0 // pred_check
    _
  $region3: #{tpu_custom_call.1} parent=0 // pred_check_branch
    %8 = sbr.rel (0) target = $region5
  $region4: #{tpu_custom_call.1} parent=0 // pred_region
    _
  $region5: #{tpu_custom_call.1} parent=0 // pred_fallthru
    _
  // Predicated region
  $region6: #{tpu_custom_call.1} parent=0 // pred_check
    _
  $region7: #{tpu_custom_call.1} parent=0 // pred_check_branch
    %10 = sbr.rel (0) target = $region9
  $region8: #{tpu_custom_call.1} parent=0 // pred_region
    _
  $region9: #{tpu_custom_call.1} parent=0 // pred_fallthru
    _
  %v11 = vld [vmem:[%s0] sm:$0xff]
  %v12 = vld [vmem:[%s0 + $0x8] sm:$0xff]
  %vm13 = vcmask 261120
  %v14 = vsel %vm13, %v11, -inf
  %15 = vmax.xlane.f32.xlu0 %v14
  %v16 = vpop.xlane.xlu0 %15
  %v17 = vsel %vm13, %v12, -inf
  %18 = vmax.xlane.f32.xlu0 %v17
  %v19 = vpop.xlane.xlu0 %18
  %v20 = vsub.f32 %v11, %v16
  %v21 = vsub.f32 %v12, %v19
  %v22 = vmul.f32 %v20, 1.442695
  %v23 = vpow.pop %v22
  %v24 = vmul.f32 %v21, 1.442695
  %v25 = vpow.pop %v24
  %v26 = vsel %vm13, %v23, 0.0
  %27 = vadd.xlane.f32.xlu0 %v26
  %v28 = vpop.xlane.xlu0 %27
  %v29 = vsel %vm13, %v25, 0.0
  %30 = vadd.xlane.f32.xlu0 %v29
  %v31 = vpop.xlane.xlu0 %30
  %v32 = vlog2.pop %v28
  %v33 = vmul.f32 %v32, 0.6931472
  %v34 = vlog2.pop %v31
  %v35 = vmul.f32 %v34, 0.6931472
  %v36 = vadd.f32 %v16, %v33
  %v37 = vadd.f32 %v19, %v35
  %v38 = vld [vmem:[%s1] sm:$0xff]
  %v39 = vld [vmem:[%s1 + $0x8] sm:$0xff]
  %v40 = vlaneseq
  %v41 = vand.u32 %v40, 127
  %42 = vset.pattern.permute.xlu0 0
  %43 = vperm.xlu0 %42, %v38
  %v44 = vpop.permute.xlu0 %43
  %45 = vset.pattern.permute.xlu0 0
  %46 = vperm.xlu0 %45, %v39
  %v47 = vpop.permute.xlu0 %46
  %vm48 = vcmp.eq.s32.totalorder %v41, %v44
  %vm49 = vcmp.eq.s32.totalorder %v41, %v47
  %v50 = vsel %vm48, %v11, 0.0
  %v51 = vsel %vm49, %v12, 0.0
  %v52 = vsel %vm13, %v50, 0.0
  %53 = vadd.xlane.f32.xlu0 %v52
  %v54 = vpop.xlane.xlu0 %53
  %v55 = vsel %vm13, %v51, 0.0
  %56 = vadd.xlane.f32.xlu0 %v55
  %v57 = vpop.xlane.xlu0 %56
  %v58 = vsub.f32 %v36, %v54
  %v59 = vsub.f32 %v37, %v57
  %vm60 = vcmask 7168
  %61 = vst.msk [vmem:[%s2] sm:$0xff] %vm60, %v58
  %62 = vst.msk [vmem:[%s2 + $0x8] sm:$0xff] %vm60, %v59
  // Predicated region
  $region10: #{tpu_custom_call.1} parent=0 // pred_check
    _
  $region11: #{tpu_custom_call.1} parent=0 // pred_check_branch
    %64 = sbr.rel (0) target = $region13
  $region12: #{tpu_custom_call.1} parent=0 // pred_region
    _
  $region13: #{tpu_custom_call.1} parent=0 // pred_fallthru
    _
  // Predicated region
  $region14: #{tpu_custom_call.1} parent=0 // pred_check
    _
  $region15: #{tpu_custom_call.1} parent=0 // pred_check_branch
    %66 = sbr.rel (0) target = $region17
  $region16: #{tpu_custom_call.1} parent=0 // pred_region
    _
  $region17: #{tpu_custom_call.1} parent=0 // pred_fallthru
    _

</llo_original>
